<compile_context>
chip_gen: v7x
topology: tpu7x:2x2x1
jax: 0.10.0
libtpu: 0.0.40
codegen_flags: <defaults>
</compile_context>

<pallas_src>
import functools

import jax
import jax.numpy as jnp
import numpy as np
from jax.experimental import pallas as pl
from jax.experimental.pallas import tpu as pltpu


def _actor_mlp_kernel(x_ref, w1_ref, b1_ref, w2_ref, b2_ref, out_ref):
    # x_ref: (TB, S)   w1_ref: (S, Hp)   b1_ref: (1, Hp)
    # w2_ref: (Hp, Hp) b2_ref: (1, Hp)   out_ref: (TB, Hp)
    x = x_ref[...]
    h = jnp.tanh(jnp.dot(x, w1_ref[...],
                         preferred_element_type=jnp.float32) + b1_ref[...])
    h = jnp.tanh(jnp.dot(h, w2_ref[...],
                         preferred_element_type=jnp.float32) + b2_ref[...])
    out_ref[...] = h


def prepare_actor_params(w1, b1, w2, b2, *, lane=128):
    """One-time parameter prep (outside the per-call hot path).

    Takes torch nn.Linear layout (out, in) / (out,) weights, returns
    (in, out)-layout weights zero-padded so the hidden dim is a multiple of
    128 lanes.  Padding with exact zeros keeps results bit-identical after
    slicing (tanh(0) == 0).
    """
    H, S = w1.shape
    Hp = ((H + lane - 1) // lane) * lane

    w1t = jnp.zeros((S, Hp), jnp.float32).at[:, :H].set(
        jnp.transpose(w1).astype(jnp.float32))
    b1p = jnp.zeros((1, Hp), jnp.float32).at[0, :H].set(b1.astype(jnp.float32))
    w2t = jnp.zeros((Hp, Hp), jnp.float32).at[:H, :H].set(
        jnp.transpose(w2).astype(jnp.float32))
    b2p = jnp.zeros((1, Hp), jnp.float32).at[0, :H].set(b2.astype(jnp.float32))
    return w1t, b1p, w2t, b2p, H


@functools.partial(jax.jit, static_argnames=("hidden_dim", "max_tile_b"))
def discrete_actor_forward(state, w1t, b1p, w2t, b2p, *,
                           hidden_dim, max_tile_b=512):
    """Forward pass of DiscreteActorNet: tanh(l2(tanh(l1(state)))).

    state: (B, state_dim) f32
    w1t/b1p/w2t/b2p: outputs of prepare_actor_params (lane-padded, (in,out)).
    returns: (B, hidden_dim) f32
    """
    B, S = state.shape
    Hp = w1t.shape[1]

    # Batch padded to a multiple of 8 (sublane rule); tile covers the whole
    # padded batch in one grid step when possible, otherwise capped at
    # max_tile_b (multiple of 128) so each grid step dwarfs the fixed
    # per-step pipeline overhead.
    B8 = ((B + 7) // 8) * 8
    tile_b = B8 if B8 <= max_tile_b else max_tile_b
    Bp = ((B8 + tile_b - 1) // tile_b) * tile_b

    xp = state.astype(jnp.float32)
    if Bp != B:
        xp = jnp.pad(xp, ((0, Bp - B), (0, 0)))

    out = pl.pallas_call(
        _actor_mlp_kernel,
        out_shape=jax.ShapeDtypeStruct((Bp, Hp), jnp.float32),
        grid_spec=pltpu.PrefetchScalarGridSpec(
            num_scalar_prefetch=0,
            grid=(Bp // tile_b,),
            in_specs=[
                pl.BlockSpec((tile_b, S), lambda i: (i, 0)),   # batch tile
                pl.BlockSpec((S, Hp), lambda i: (0, 0)),       # W1 (resident)
                pl.BlockSpec((1, Hp), lambda i: (0, 0)),       # b1
                pl.BlockSpec((Hp, Hp), lambda i: (0, 0)),      # W2 (resident)
                pl.BlockSpec((1, Hp), lambda i: (0, 0)),       # b2
            ],
            out_specs=pl.BlockSpec((tile_b, Hp), lambda i: (i, 0)),
        ),
        compiler_params=pltpu.CompilerParams(
            dimension_semantics=("parallel",)),
    )(xp, w1t, b1p, w2t, b2p)

    return out[:B, :hidden_dim]


def _reference_forward(state, w1, b1, w2, b2):
    """Pure-JAX reference mirroring the PyTorch forward()."""
    h = jnp.tanh(state @ w1.T + b1)
    return jnp.tanh(h @ w2.T + b2)


# TODO(synk): get_action's l3 + softmax + torch.multinomial (Categorical
# sampling) is host-side RL glue outside forward(); not implemented here.


if __name__ == "__main__":
    key = jax.random.PRNGKey(0)
    kx, k1, k2, k3, k4 = jax.random.split(key, 5)

    # Small shapes consistent with the module: batch=16, state_dim=8, hidden=64.
    B, state_dim, hidden_dim = 16, 8, 64
    x = jax.random.normal(kx, (B, state_dim), dtype=jnp.float32)

    # Deterministic synthetic parameters (nn.Linear layout: (out, in) + (out,)).
    w1 = 0.20 * jax.random.normal(k1, (hidden_dim, state_dim), dtype=jnp.float32)
    b1 = 0.10 * jax.random.normal(k2, (hidden_dim,), dtype=jnp.float32)
    w2 = 0.20 * jax.random.normal(k3, (hidden_dim, hidden_dim), dtype=jnp.float32)
    b2 = 0.10 * jax.random.normal(k4, (hidden_dim,), dtype=jnp.float32)

    # One-time parameter prep (transpose + 128-lane zero padding), hoisted out
    # of the per-call path.
    w1t, b1p, w2t, b2p, H = prepare_actor_params(w1, b1, w2, b2)

    out = jax.block_until_ready(
        discrete_actor_forward(x, w1t, b1p, w2t, b2p, hidden_dim=H))
    ref = jax.block_until_ready(_reference_forward(x, w1, b1, w2, b2))

    assert out.shape == (B, hidden_dim), out.shape
    np.testing.assert_allclose(np.asarray(out), np.asarray(ref),
                               rtol=1e-5, atol=1e-5)
    print("KERNEL_OK")
</pallas_src>

<mosaic_0001>
module attributes {stable_mosaic.version = 11 : i64} {
  func.func @_actor_mlp_kernel(%arg0: i32, %arg1: memref<16x8xf32, #tpu.memory_space<vmem>>, %arg2: memref<8x128xf32, #tpu.memory_space<vmem>>, %arg3: memref<1x128xf32, #tpu.memory_space<vmem>>, %arg4: memref<128x128xf32, #tpu.memory_space<vmem>>, %arg5: memref<1x128xf32, #tpu.memory_space<vmem>>, %arg6: memref<16x128xf32, #tpu.memory_space<vmem>>) attributes {dimension_semantics = [#tpu.dimension_semantics<parallel>], iteration_bounds = array<i64: 1>, scalar_prefetch = 0 : i64, scratch_operands = 0 : i64, tpu.core_type = #tpu.core_type<tc>, window_params = [{transform_indices = @transform_0, window_bounds = array<i64: 16, 8>}, {pipeline_mode = #tpu.pipeline_mode<synchronous>, transform_indices = @transform_1, window_bounds = array<i64: 8, 128>}, {pipeline_mode = #tpu.pipeline_mode<synchronous>, transform_indices = @transform_2, window_bounds = array<i64: 1, 128>}, {pipeline_mode = #tpu.pipeline_mode<synchronous>, transform_indices = @transform_3, window_bounds = array<i64: 128, 128>}, {pipeline_mode = #tpu.pipeline_mode<synchronous>, transform_indices = @transform_4, window_bounds = array<i64: 1, 128>}, {transform_indices = @transform_5, window_bounds = array<i64: 16, 128>}]} {
    %c0 = arith.constant 0 : index
    %c0_0 = arith.constant 0 : index
    %0 = vector.load %arg1[%c0, %c0_0] : memref<16x8xf32, #tpu.memory_space<vmem>>, vector<16x8xf32>
    %c0_1 = arith.constant 0 : index
    %c0_2 = arith.constant 0 : index
    %1 = vector.load %arg2[%c0_1, %c0_2] : memref<8x128xf32, #tpu.memory_space<vmem>>, vector<8x128xf32>
    %cst = arith.constant dense<0.000000e+00> : vector<16x128xf32>
    %2 = tpu.matmul %0, %1, %cst {dimension_numbers = #tpu.dot_dimension_numbers<[1], [0], [0], [1], [0, 0, 1, 1], [], []>} : vector<16x8xf32>, vector<8x128xf32>, vector<16x128xf32> -> vector<16x128xf32>
    %c0_3 = arith.constant 0 : index
    %c0_4 = arith.constant 0 : index
    %3 = vector.load %arg3[%c0_3, %c0_4] : memref<1x128xf32, #tpu.memory_space<vmem>>, vector<1x128xf32>
    %4 = vector.broadcast %3 : vector<1x128xf32> to vector<16x128xf32>
    %5 = arith.addf %2, %4 : vector<16x128xf32>
    %6 = math.tanh %5 : vector<16x128xf32>
    %c0_5 = arith.constant 0 : index
    %c0_6 = arith.constant 0 : index
    %7 = vector.load %arg4[%c0_5, %c0_6] : memref<128x128xf32, #tpu.memory_space<vmem>>, vector<128x128xf32>
    %cst_7 = arith.constant dense<0.000000e+00> : vector<16x128xf32>
    %8 = tpu.matmul %6, %7, %cst_7 {dimension_numbers = #tpu.dot_dimension_numbers<[1], [0], [0], [1], [0, 0, 1, 1], [], []>} : vector<16x128xf32>, vector<128x128xf32>, vector<16x128xf32> -> vector<16x128xf32>
    %c0_8 = arith.constant 0 : index
    %c0_9 = arith.constant 0 : index
    %9 = vector.load %arg5[%c0_8, %c0_9] : memref<1x128xf32, #tpu.memory_space<vmem>>, vector<1x128xf32>
    %10 = vector.broadcast %9 : vector<1x128xf32> to vector<16x128xf32>
    %11 = arith.addf %8, %10 : vector<16x128xf32>
    %12 = math.tanh %11 : vector<16x128xf32>
    %c0_10 = arith.constant 0 : index
    %c0_11 = arith.constant 0 : index
    %13 = vector.load %arg6[%c0_10, %c0_11] : memref<16x128xf32, #tpu.memory_space<vmem>>, vector<16x128xf32>
    tpu.vector_store %arg6[%c0_10, %c0_11], %12 {strides = array<i32>} : memref<16x128xf32, #tpu.memory_space<vmem>>, vector<16x128xf32>,
    return
  }
  func.func @transform_0(%arg0: i32) -> (i32, i32) {
    %c0_i32 = arith.constant 0 : i32
    %c0_i32_0 = arith.constant 0 : i32
    return %arg0, %c0_i32 : i32, i32
  }
  func.func @transform_1(%arg0: i32) -> (i32, i32) {
    %c0_i32 = arith.constant 0 : i32
    %c0_i32_0 = arith.constant 0 : i32
    %c0_i32_1 = arith.constant 0 : i32
    return %c0_i32, %c0_i32_0 : i32, i32
  }
  func.func @transform_2(%arg0: i32) -> (i32, i32) {
    %c0_i32 = arith.constant 0 : i32
    %c0_i32_0 = arith.constant 0 : i32
    %c0_i32_1 = arith.constant 0 : i32
    return %c0_i32, %c0_i32_0 : i32, i32
  }
  func.func @transform_3(%arg0: i32) -> (i32, i32) {
    %c0_i32 = arith.constant 0 : i32
    %c0_i32_0 = arith.constant 0 : i32
    %c0_i32_1 = arith.constant 0 : i32
    return %c0_i32, %c0_i32_0 : i32, i32
  }
  func.func @transform_4(%arg0: i32) -> (i32, i32) {
    %c0_i32 = arith.constant 0 : i32
    %c0_i32_0 = arith.constant 0 : i32
    %c0_i32_1 = arith.constant 0 : i32
    return %c0_i32, %c0_i32_0 : i32, i32
  }
  func.func @transform_5(%arg0: i32) -> (i32, i32) {
    %c0_i32 = arith.constant 0 : i32
    %c0_i32_0 = arith.constant 0 : i32
    return %arg0, %c0_i32 : i32, i32
  }
}

</mosaic_0001>

<llo_original>
// kernel: discrete_actor_forward.1
$region0: #{discrete_actor_forward.1}
  #allocation0 [shape = 'u32[]', space=smem, size = 0x4, offset = 0x4, fixed_abs, tag = 'smem constant byte address 0x4 - core index']
  #allocation1 [shape = 'u32[144,128]{1,0:T(1,128)}', space=vmem, size = 0x12000, scoped, tag = 'internal scratch']
  %s0 = inlined_call_operand.vmem [shape: f32[16,8], index: 0, kind: input, shape index: {}]
  %s1 = inlined_call_operand.vmem [shape: f32[8,128], index: 1, kind: input, shape index: {}]
  %s2 = inlined_call_operand.vmem [shape: f32[1,128], index: 2, kind: input, shape index: {}]
  %s3 = inlined_call_operand.hbm [shape: f32[128,128], index: 3, kind: input, shape index: {}]
  %s4 = inlined_call_operand.vmem [shape: f32[1,128], index: 4, kind: input, shape index: {}]
  %s5 = inlined_call_operand.hbm [shape: f32[16,128], index: 5, kind: output, shape index: {}]
  %s6 = sld [smem:[#allocation0]]
  $region34: #{discrete_actor_forward.1} parent=0
    _
  %s8 = ssub.s32 1, %s6
  %s9 = scalar_select 0, %s8, %s6
  $region1: #{discrete_actor_forward.1} parent=0
    #allocation2 [shape = 'u8[65536]{0}', space=vmem, size = 0x10000, scoped, tag = 'input window, operand 3, single buffered']
    #allocation3 [shape = 's32[1]{0}', space=sflag, size = 0x4, scoped, tag = 'scoped memory for discrete_actor_forward.1']
    #allocation4 [shape = 's32[1]{0}', space=sflag, size = 0x4, scoped, tag = 'scoped memory for discrete_actor_forward.1']
    #allocation5 [shape = 'u8[8192]{0}', space=vmem, size = 0x2000, scoped, tag = 'output window, operand 0, single buffered']
    %10 = vsyncpa [#allocation3], 0
    %11 = vsyncpa [#allocation4], 0
    // Predicated region
    $region2: #{discrete_actor_forward.1} parent=1 // pred_check
      _
    $region3: #{discrete_actor_forward.1} parent=1 // pred_check_branch
      %13 = sbr.rel (0) target = $region5
    $region4: #{discrete_actor_forward.1} parent=1 // pred_region
      _
    $region5: #{discrete_actor_forward.1} parent=1 // pred_fallthru
      _
    // Predicated region
    $region6: #{discrete_actor_forward.1} parent=1 // pred_check
      _
    $region7: #{discrete_actor_forward.1} parent=1 // pred_check_branch
      %15 = sbr.rel (0) target = $region9
    $region8: #{discrete_actor_forward.1} parent=1 // pred_region
      _
    $region9: #{discrete_actor_forward.1} parent=1 // pred_fallthru
      _
    // Predicated region
    $region10: #{discrete_actor_forward.1} parent=1 // pred_check
      _
    $region11: #{discrete_actor_forward.1} parent=1 // pred_check_branch
      %17 = sbr.rel (0) target = $region13
    $region12: #{discrete_actor_forward.1} parent=1 // pred_region
      _
    $region13: #{discrete_actor_forward.1} parent=1 // pred_fallthru
      _
    // Predicated region
    $region14: #{discrete_actor_forward.1} parent=1 // pred_check
      _
    $region15: #{discrete_actor_forward.1} parent=1 // pred_check_branch
      %19 = sbr.rel (0) target = $region17
    $region16: #{discrete_actor_forward.1} parent=1 // pred_region
      %s21 = ssub.s32 2048, 2048
      %22 = vsyncadd [#allocation3], %s21
      %s23 = sshll.u32 [#allocation2], 4
      %s24 = int_to_ptr.vmem [resolvable:$true] %s23
      %29 = dma.hbm_to_vmem [thread:$0]  %s3, 2048, %s24, [#allocation3], 128, 128, 8
    $region17: #{discrete_actor_forward.1} parent=1 // pred_fallthru
      _
    // Predicated region
    $region18: #{discrete_actor_forward.1} parent=1 // pred_check
      _
    $region19: #{discrete_actor_forward.1} parent=1 // pred_check_branch
      %31 = sbr.rel (0) target = $region21
    $region20: #{discrete_actor_forward.1} parent=1 // pred_region
      _
    $region21: #{discrete_actor_forward.1} parent=1 // pred_fallthru
      _
    // Predicated region
    $region22: #{discrete_actor_forward.1} parent=1 // pred_check
      _
    $region23: #{discrete_actor_forward.1} parent=1 // pred_check_branch
      %33 = sbr.rel (0) target = $region25
    $region24: #{discrete_actor_forward.1} parent=1 // pred_region
      %34 = dma.done [#allocation3], 2048
    $region25: #{discrete_actor_forward.1} parent=1 // pred_fallthru
      _
    %v35 = vld [vmem:[%s0] sm:$0xff]
    %v36 = vld [vmem:[%s0 + $0x8] sm:$0xff]
    %v37 = vld [vmem:[%s1] sm:$0xff]
    %v38 = vld [vmem:[%s2] sm:$0x1]
    %v40 = vlaneseq
    %v41 = vshrl.u32 %v40, 7
    %v42 = vsub.s32 0, %v41
    %v43 = vrot.slane %v38, %v42
    %vm45 = vcmask 64512
    %v47 = vsel %vm45, %v35, 0
    %v50 = vsel %vm45, %v36, 0
    %52 = vmatprep.subr.mxu0 0.0
    %53 = vmatpush1.msra.mxu0 %v37
    %54 = vmatprep.subr.mxu0 0.0
    %55 = vmatpush1.msra.mxu0 0.0
    %56 = vmatprep.subr.mxu0 0.0
    %57 = vmatpush1.msra.mxu0 0.0
    %58 = vmatprep.subr.mxu0 0.0
    %59 = vmatpush1.msra.mxu0 0.0
    %60 = vmatprep.subr.mxu0 0.0
    %61 = vmatpush1.msra.mxu0 0.0
    %62 = vmatprep.subr.mxu0 0.0
    %63 = vmatpush1.msra.mxu0 0.0
    %64 = vmatprep.subr.mxu0 0.0
    %65 = vmatpush1.msra.mxu0 0.0
    %66 = vmatprep.subr.mxu0 0.0
    %67 = vmatpush1.msra.mxu0 0.0
    %68 = vmatprep.subr.mxu0 0.0
    %69 = vmatpush1.msra.mxu0 0.0
    %70 = vmatprep.subr.mxu0 0.0
    %71 = vmatpush1.msra.mxu0 0.0
    %72 = vmatprep.subr.mxu0 0.0
    %73 = vmatpush1.msra.mxu0 0.0
    %74 = vmatprep.subr.mxu0 0.0
    %75 = vmatpush1.msra.mxu0 0.0
    %76 = vmatprep.subr.mxu0 0.0
    %77 = vmatpush1.msra.mxu0 0.0
    %78 = vmatprep.subr.mxu0 0.0
    %79 = vmatpush1.msra.mxu0 0.0
    %80 = vmatprep.subr.mxu0 0.0
    %81 = vmatpush1.msra.mxu0 0.0
    %82 = vmatprep.subr.mxu0 0.0
    %83 = vmatpush1.msra.mxu0 0.0
    %84 = vmatprep.subr.mxu0 0.0
    %85 = vmatpush1.msra.mxu0 0.0
    %86 = vmatprep.subr.mxu0 0.0
    %87 = vmatpush1.msra.mxu0 0.0
    %88 = vmatprep.subr.mxu0 0.0
    %89 = vmatpush1.msra.mxu0 0.0
    %90 = vmatprep.subr.mxu0 0.0
    %91 = vmatpush1.msra.mxu0 0.0
    %92 = vmatprep.subr.mxu0 0.0
    %93 = vmatpush1.msra.mxu0 0.0
    %94 = vmatprep.subr.mxu0 0.0
    %95 = vmatpush1.msra.mxu0 0.0
    %96 = vmatprep.subr.mxu0 0.0
    %97 = vmatpush1.msra.mxu0 0.0
    %98 = vmatprep.subr.mxu0 0.0
    %99 = vmatpush1.msra.mxu0 0.0
    %100 = vmatprep.subr.mxu0 0.0
    %101 = vmatpush1.msra.mxu0 0.0
    %102 = vmatprep.subr.mxu0 0.0
    %103 = vmatpush1.msra.mxu0 0.0
    %104 = vmatprep.subr.mxu0 0.0
    %105 = vmatpush1.msra.mxu0 0.0
    %106 = vmatprep.subr.mxu0 0.0
    %107 = vmatpush1.msra.mxu0 0.0
    %108 = vmatprep.subr.mxu0 0.0
    %109 = vmatpush1.msra.mxu0 0.0
    %110 = vmatprep.subr.mxu0 0.0
    %111 = vmatpush1.msra.mxu0 0.0
    %112 = vmatprep.subr.mxu0 0.0
    %113 = vmatpush1.msra.mxu0 0.0
    %114 = vmatprep.subr.mxu0 0.0
    %115 = vmatpush1.msra.mxu0 0.0
    %116 = vmatprep.mubr.f32.mxu0 0.0
    %117 = vmatmul.mubr.f32.gmra.mrb[0].mxu0 %v47
    %v118 = vpop.f32.mrb[0].mxu0
    %v119 = vadd.f32 %v43, %v118
    %v120 = vpop.f32.mrb[0].mxu0
    %121 = vmatprep.mubr.f32.mxu0 0.0
    %122 = vmatmul.mubr.f32.gmra.mrb[0].mxu0 %v50
    %v123 = vpop.f32.mrb[0].mxu0
    %v124 = vadd.f32 %v43, %v123
    %v125 = vpop.f32.mrb[0].mxu0
    %126 = vdwg.mxu0
    %v127 = vtanh.pop %v119
    %v128 = vtanh.pop %v124
    %v129 = vld [vmem:[#allocation2] sm:$0xff]
    %v130 = vld [vmem:[#allocation2 + $0x8] sm:$0xff]
    %v131 = vld [vmem:[#allocation2 + $0x10] sm:$0xff]
    %v132 = vld [vmem:[#allocation2 + $0x18] sm:$0xff]
    %v133 = vld [vmem:[#allocation2 + $0x20] sm:$0xff]
    %v134 = vld [vmem:[#allocation2 + $0x28] sm:$0xff]
    %v135 = vld [vmem:[#allocation2 + $0x30] sm:$0xff]
    %v136 = vld [vmem:[#allocation2 + $0x38] sm:$0xff]
    %v137 = vld [vmem:[#allocation2 + $0x40] sm:$0xff]
    %v138 = vld [vmem:[#allocation2 + $0x48] sm:$0xff]
    %v139 = vld [vmem:[#allocation2 + $0x50] sm:$0xff]
    %v140 = vld [vmem:[#allocation2 + $0x58] sm:$0xff]
    %v141 = vld [vmem:[#allocation2 + $0x60] sm:$0xff]
    %v142 = vld [vmem:[#allocation2 + $0x68] sm:$0xff]
    %v143 = vld [vmem:[#allocation2 + $0x70] sm:$0xff]
    %v144 = vld [vmem:[#allocation2 + $0x78] sm:$0xff]
    %v145 = vld [vmem:[%s4] sm:$0x1]
    %v147 = vlaneseq
    %v148 = vshrl.u32 %v147, 7
    %v149 = vsub.s32 0, %v148
    %v150 = vrot.slane %v145, %v149
    %152 = vmatprep.subr.mxu0 0.0
    %153 = vmatpush1.msra.mxu0 %v129
    %154 = vmatprep.subr.mxu0 0.0
    %155 = vmatpush1.msra.mxu0 %v130
    %156 = vmatprep.subr.mxu0 0.0
    %157 = vmatpush1.msra.mxu0 %v131
    %158 = vmatprep.subr.mxu0 0.0
    %159 = vmatpush1.msra.mxu0 %v132
    %160 = vmatprep.subr.mxu0 0.0
    %161 = vmatpush1.msra.mxu0 %v133
    %162 = vmatprep.subr.mxu0 0.0
    %163 = vmatpush1.msra.mxu0 %v134
    %164 = vmatprep.subr.mxu0 0.0
    %165 = vmatpush1.msra.mxu0 %v135
    %166 = vmatprep.subr.mxu0 0.0
    %167 = vmatpush1.msra.mxu0 %v136
    %168 = vmatprep.subr.mxu0 0.0
    %169 = vmatpush1.msra.mxu0 %v137
    %170 = vmatprep.subr.mxu0 0.0
    %171 = vmatpush1.msra.mxu0 %v138
    %172 = vmatprep.subr.mxu0 0.0
    %173 = vmatpush1.msra.mxu0 %v139
    %174 = vmatprep.subr.mxu0 0.0
    %175 = vmatpush1.msra.mxu0 %v140
    %176 = vmatprep.subr.mxu0 0.0
    %177 = vmatpush1.msra.mxu0 %v141
    %178 = vmatprep.subr.mxu0 0.0
    %179 = vmatpush1.msra.mxu0 %v142
    %180 = vmatprep.subr.mxu0 0.0
    %181 = vmatpush1.msra.mxu0 %v143
    %182 = vmatprep.subr.mxu0 0.0
    %183 = vmatpush1.msra.mxu0 %v144
    %184 = vmatprep.subr.mxu0 0.0
    %185 = vmatpush1.msra.mxu0 0.0
    %186 = vmatprep.subr.mxu0 0.0
    %187 = vmatpush1.msra.mxu0 0.0
    %188 = vmatprep.subr.mxu0 0.0
    %189 = vmatpush1.msra.mxu0 0.0
    %190 = vmatprep.subr.mxu0 0.0
    %191 = vmatpush1.msra.mxu0 0.0
    %192 = vmatprep.subr.mxu0 0.0
    %193 = vmatpush1.msra.mxu0 0.0
    %194 = vmatprep.subr.mxu0 0.0
    %195 = vmatpush1.msra.mxu0 0.0
    %196 = vmatprep.subr.mxu0 0.0
    %197 = vmatpush1.msra.mxu0 0.0
    %198 = vmatprep.subr.mxu0 0.0
    %199 = vmatpush1.msra.mxu0 0.0
    %200 = vmatprep.subr.mxu0 0.0
    %201 = vmatpush1.msra.mxu0 0.0
    %202 = vmatprep.subr.mxu0 0.0
    %203 = vmatpush1.msra.mxu0 0.0
    %204 = vmatprep.subr.mxu0 0.0
    %205 = vmatpush1.msra.mxu0 0.0
    %206 = vmatprep.subr.mxu0 0.0
    %207 = vmatpush1.msra.mxu0 0.0
    %208 = vmatprep.subr.mxu0 0.0
    %209 = vmatpush1.msra.mxu0 0.0
    %210 = vmatprep.subr.mxu0 0.0
    %211 = vmatpush1.msra.mxu0 0.0
    %212 = vmatprep.subr.mxu0 0.0
    %213 = vmatpush1.msra.mxu0 0.0
    %214 = vmatprep.subr.mxu0 0.0
    %215 = vmatpush1.msra.mxu0 0.0
    %216 = vmatprep.mubr.f32.mxu0 0.0
    %217 = vmatmul.mubr.f32.gmra.mrb[0].mxu0 %v127
    %v218 = vpop.f32.mrb[0].mxu0
    %v219 = vadd.f32 %v150, %v218
    %v220 = vpop.f32.mrb[0].mxu0
    %221 = vmatprep.mubr.f32.mxu0 0.0
    %222 = vmatmul.mubr.f32.gmra.mrb[0].mxu0 %v128
    %v223 = vpop.f32.mrb[0].mxu0
    %v224 = vadd.f32 %v150, %v223
    %v225 = vpop.f32.mrb[0].mxu0
    %226 = vdwg.mxu0
    %v227 = vtanh.pop %v219
    %v228 = vtanh.pop %v224
    %229 = vst [vmem:[#allocation5] sm:$0xff] %v227
    %230 = vst [vmem:[#allocation5 + $0x8] sm:$0xff] %v228
    // Predicated region
    $region26: #{discrete_actor_forward.1} parent=1 // pred_check
      _
    $region27: #{discrete_actor_forward.1} parent=1 // pred_check_branch
      %232 = sbr.rel (0) target = $region29
    $region28: #{discrete_actor_forward.1} parent=1 // pred_region
      %s234 = ssub.s32 256, 256
      %235 = vsyncadd [#allocation4], %s234
      %s236 = sshll.u32 [#allocation5], 4
      %s237 = int_to_ptr.vmem [resolvable:$true] %s236
      %242 = dma.vmem_to_hbm [thread:$0]  %s237, 256, %s5, [#allocation4], 128, 128, 8
    $region29: #{discrete_actor_forward.1} parent=1 // pred_fallthru
      _
    // Predicated region
    $region30: #{discrete_actor_forward.1} parent=1 // pred_check
      _
    $region31: #{discrete_actor_forward.1} parent=1 // pred_check_branch
      %244 = sbr.rel (0) target = $region33
    $region32: #{discrete_actor_forward.1} parent=1 // pred_region
      %245 = dma.done [#allocation4], 256
    $region33: #{discrete_actor_forward.1} parent=1 // pred_fallthru
      _
    %246 = vsyncpa [#allocation3], 1
    %247 = vsyncpa [#allocation4], 1

</llo_original>
